<compile_context>
chip_gen: v7x
topology: tpu7x:2x2x1
jax: 0.10.0
libtpu: 0.0.40
codegen_flags: <defaults>
</compile_context>

<pallas_src>
import functools

import jax
import jax.numpy as jnp
from jax.experimental import pallas as pl
from jax.experimental.pallas import tpu as pltpu


_PASS1_BLOCK_BYTES = 6 * 1024 * 1024   # stats pass: only x is double-buffered
_PASS2_BLOCK_BYTES = 4 * 1024 * 1024   # normalize pass: x and out are both double-buffered
_VMEM_LIMIT_BYTES = 32 * 1024 * 1024
_STATIC_UNROLL_MAX = 32                # fully unroll the chunk loop up to this many chunks


def _pick_c_tile(C, itemsize):
    """Channel tile: divides C, multiple of the dtype sublane granule, capped at 64.

    Prefers >= 2 channel tiles so the 'parallel' channel grid axis can be split across the
    two v7x TensorCores; falls back to full C when the divisor structure is degenerate.
    """
    gran = 8 if itemsize >= 4 else (16 if itemsize == 2 else 32)
    if C % gran != 0:
        gran = 8
    if C % gran != 0:
        return C                                   # full-dim block is always legal
    divs = [d for d in range(gran, min(C, 64) + 1, gran) if C % d == 0]
    if not divs or max(divs) * 4 < C:              # e.g. C=136 -> only 8 divides: use full C
        return C
    split = [d for d in divs if C // d >= 2]
    return max(split) if split else max(divs)


def _pick_spatial_tiles(N, HW, c_tile, itemsize, block_budget_bytes):
    """Pick (n_tile, hw_tile, needs_mask) for a (n_tile, c_tile, hw_tile) block."""
    budget_elems = max(block_budget_bytes // itemsize, c_tile * 128)
    if HW <= 128:
        hw_tile = HW                               # full last dim: always legal, no mask
    else:
        hw_aligned = (HW // 128) * 128
        hw_cap = max(128, min(hw_aligned, (budget_elems // c_tile) // 128 * 128))
        hw_tile = hw_cap
        # Prefer a multiple-of-128 tile that exactly divides HW -> no tail mask at all.
        for cand in range(hw_cap, 127, -128):
            if HW % cand == 0:
                hw_tile = cand
                break
    needs_mask = (HW % hw_tile) != 0
    # Fold batch images into the block while it stays under budget (small feature maps).
    n_cap = max(1, budget_elems // (c_tile * hw_tile))
    n_tile = 1
    for d in range(1, N + 1):
        if N % d == 0 and d <= n_cap:
            n_tile = d
    return n_tile, hw_tile, needs_mask


def _stats_kernel(x_ref, gamma_ref, beta_ref, scale_ref, shift_ref, sum_sc, sq_sc,
                  *, eps, inv_count, hw, hw_tile, lane_w, n_tile, needs_mask, unroll_static):
    """Accumulate per-channel sum / sum-of-squares; emit folded (scale, shift) at the end."""
    ni = pl.program_id(1)
    hwi = pl.program_id(2)
    is_first = jnp.logical_and(ni == 0, hwi == 0)
    is_last = jnp.logical_and(ni == pl.num_programs(1) - 1,
                              hwi == pl.num_programs(2) - 1)

    @pl.when(is_first)
    def _init():
        sum_sc[...] = jnp.zeros_like(sum_sc)
        sq_sc[...] = jnp.zeros_like(sq_sc)

    c_tile = sum_sc.shape[0]
    n_lane_chunks = hw_tile // lane_w
    total_chunks = n_tile * n_lane_chunks

    def accumulate(masked):
        # Lane-index tensor is built ONCE per grid step (and only on the tail block).
        if masked:
            lane = jax.lax.broadcasted_iota(jnp.int32, (c_tile, lane_w), 1)
            base = hw - hwi * hw_tile              # number of valid lanes in this block

        def body(t, carry):
            s, ss = carry
            if isinstance(t, int):                 # statically unrolled path
                n, j = divmod(t, n_lane_chunks)
                start = j * lane_w
            else:                                  # fori_loop path
                if n_lane_chunks == 1:
                    n, j = t, 0
                elif n_tile == 1:
                    n, j = 0, t
                else:
                    n = t // n_lane_chunks
                    j = t - n * n_lane_chunks
                start = pl.multiple_of(j * lane_w, lane_w)
            blk = x_ref[n, :, pl.ds(start, lane_w)].astype(jnp.float32)
            if masked:
                blk = jnp.where(lane < (base - j * lane_w), blk, 0.0)
            return s + blk, ss + blk * blk

        zero = jnp.zeros((c_tile, lane_w), jnp.float32)
        if unroll_static:
            s, ss = zero, zero
            for t in range(total_chunks):
                s, ss = body(t, (s, ss))
        else:
            s, ss = jax.lax.fori_loop(0, total_chunks, body, (zero, zero), unroll=4)
        # Single scratch read-modify-write per grid step.
        sum_sc[...] += s
        sq_sc[...] += ss

    if needs_mask:
        is_tail = hwi == pl.num_programs(2) - 1

        @pl.when(is_tail)
        def _masked():
            accumulate(True)

        @pl.when(jnp.logical_not(is_tail))
        def _unmasked():
            accumulate(False)
    else:
        accumulate(False)

    @pl.when(is_last)
    def _finalize():
        mean = jnp.sum(sum_sc[...], axis=-1, keepdims=True) * inv_count
        ex2 = jnp.sum(sq_sc[...], axis=-1, keepdims=True) * inv_count
        # Biased variance, as BatchNorm2d uses for normalization in training mode.
        var = jnp.maximum(ex2 - mean * mean, 0.0)
        inv_std = jax.lax.rsqrt(var + eps)
        scale = gamma_ref[...] * inv_std           # (c_tile, 1)
        scale_ref[...] = scale
        shift_ref[...] = beta_ref[...] - mean * scale


def _norm_kernel(x_ref, scale_ref, shift_ref, o_ref, *, neg_slope):
    """y = x * scale + shift ; LeakyReLU(neg_slope). Pure elementwise per tile."""
    x = x_ref[...].astype(jnp.float32)                         # (n_tile, c_tile, hw_tile)
    c = scale_ref.shape[0]
    y = x * scale_ref[...].reshape(1, c, 1) + shift_ref[...].reshape(1, c, 1)
    if 0.0 <= neg_slope < 1.0:
        y = jnp.maximum(y, y * neg_slope)                      # single VALU op per element
    else:
        y = jnp.where(y >= 0.0, y, y * neg_slope)
    o_ref[...] = y.astype(o_ref.dtype)


def bn2d_lrelu(x_nchw, gamma, beta, *, eps=1e-5, negative_slope=0.01):
    """x_nchw: (N, C, H, W); gamma, beta: (C,). Returns LeakyReLU(BatchNorm2d(x))."""
    N, C, H, W = x_nchw.shape
    HW = H * W
    itemsize = jnp.dtype(x_nchw.dtype).itemsize

    x3 = x_nchw.reshape(N, C, HW)                              # free reshape, no transpose
    g2d = gamma.reshape(C, 1).astype(jnp.float32)
    b2d = beta.reshape(C, 1).astype(jnp.float32)

    c_tile = _pick_c_tile(C, itemsize)
    n1, hw1, mask1 = _pick_spatial_tiles(N, HW, c_tile, itemsize, _PASS1_BLOCK_BYTES)
    n2, hw2, _ = _pick_spatial_tiles(N, HW, c_tile, itemsize, _PASS2_BLOCK_BYTES)
    lane_w = min(128, hw1)
    total_chunks1 = n1 * (hw1 // lane_w)

    grid1 = (C // c_tile, N // n1, pl.cdiv(HW, hw1))
    grid2 = (C // c_tile, N // n2, pl.cdiv(HW, hw2))

    x_spec1 = pl.BlockSpec((n1, c_tile, hw1), lambda ci, ni, hwi: (ni, ci, hwi))
    x_spec2 = pl.BlockSpec((n2, c_tile, hw2), lambda ci, ni, hwi: (ni, ci, hwi))
    vec_spec = pl.BlockSpec((c_tile, 1), lambda ci, ni, hwi: (ci, 0))

    # ---- Pass 1: per-channel statistics -> folded (scale, shift) ----
    scale, shift = pl.pallas_call(
        functools.partial(
            _stats_kernel,
            eps=float(eps),
            inv_count=1.0 / float(N * HW),
            hw=HW,
            hw_tile=hw1,
            lane_w=lane_w,
            n_tile=n1,
            needs_mask=mask1,
            unroll_static=(total_chunks1 <= _STATIC_UNROLL_MAX),
        ),
        out_shape=(jax.ShapeDtypeStruct((C, 1), jnp.float32),
                   jax.ShapeDtypeStruct((C, 1), jnp.float32)),
        grid_spec=pltpu.PrefetchScalarGridSpec(
            num_scalar_prefetch=0,
            grid=grid1,
            in_specs=[x_spec1, vec_spec, vec_spec],
            out_specs=(vec_spec, vec_spec),
            scratch_shapes=[
                pltpu.VMEM((c_tile, lane_w), jnp.float32),
                pltpu.VMEM((c_tile, lane_w), jnp.float32),
            ],
        ),
        compiler_params=pltpu.CompilerParams(
            dimension_semantics=("parallel", "arbitrary", "arbitrary"),
            vmem_limit_bytes=_VMEM_LIMIT_BYTES),
    )(x3, g2d, b2d)

    # ---- Pass 2: normalize + LeakyReLU (fully elementwise, all axes parallel) ----
    out3 = pl.pallas_call(
        functools.partial(_norm_kernel, neg_slope=float(negative_slope)),
        out_shape=jax.ShapeDtypeStruct((N, C, HW), x_nchw.dtype),
        grid=grid2,
        in_specs=[x_spec2, vec_spec, vec_spec],
        out_specs=pl.BlockSpec((n2, c_tile, hw2), lambda ci, ni, hwi: (ni, ci, hwi)),
        compiler_params=pltpu.CompilerParams(
            dimension_semantics=("parallel", "parallel", "parallel"),
            vmem_limit_bytes=_VMEM_LIMIT_BYTES),
    )(x3, scale, shift)

    return out3.reshape(N, C, H, W)


if __name__ == "__main__":
    def _reference(x, gamma, beta, eps, neg):
        mean = jnp.mean(x, axis=(0, 2, 3), keepdims=True)
        var = jnp.mean((x - mean) ** 2, axis=(0, 2, 3), keepdims=True)
        y = (x - mean) * jax.lax.rsqrt(var + eps)
        y = y * gamma.reshape(1, -1, 1, 1) + beta.reshape(1, -1, 1, 1)
        return jnp.where(y >= 0, y, y * neg)

    # Primary small test (module defaults: weight=1, bias=0): batch=2, channels=4, spatial=16.
    key = jax.random.PRNGKey(0)
    N, C, H, W = 2, 4, 16, 16
    x = jax.random.normal(key, (N, C, H, W), dtype=jnp.float32)
    gamma = jnp.ones((C,), dtype=jnp.float32)
    beta = jnp.zeros((C,), dtype=jnp.float32)
    out = jax.block_until_ready(bn2d_lrelu(x, gamma, beta, eps=1e-5, negative_slope=0.01))
    ref = _reference(x, gamma, beta, 1e-5, 0.01)
    assert out.shape == x.shape
    assert jnp.max(jnp.abs(out - ref)) < 1e-4, "mismatch vs reference (primary)"

    # Secondary small test: ragged HW (68*68 not a multiple of 128) exercises the gated
    # tail mask + fori-loop chunk path and an 8-aligned channel tile with affine params.
    N2, C2, H2, W2 = 2, 8, 68, 68
    k1, k2, k3 = jax.random.split(jax.random.PRNGKey(0), 3)
    x2 = jax.random.normal(k1, (N2, C2, H2, W2), dtype=jnp.float32) * 3.0 + 0.5
    g2 = jax.random.normal(k2, (C2,), dtype=jnp.float32)
    b2 = jax.random.normal(k3, (C2,), dtype=jnp.float32)
    out2 = jax.block_until_ready(bn2d_lrelu(x2, g2, b2, eps=1e-5, negative_slope=0.01))
    ref2 = _reference(x2, g2, b2, 1e-5, 0.01)
    assert jnp.max(jnp.abs(out2 - ref2)) < 5e-3, "mismatch vs reference (ragged/fori path)"

    print("KERNEL_OK")
</pallas_src>

<mosaic_0001>
module attributes {stable_mosaic.version = 11 : i64} {
  func.func @_stats_kernel(%arg0: i32, %arg1: i32, %arg2: i32, %arg3: memref<2x4x256xf32, #tpu.memory_space<vmem>>, %arg4: memref<4x1xf32, #tpu.memory_space<vmem>>, %arg5: memref<4x1xf32, #tpu.memory_space<vmem>>, %arg6: memref<4x1xf32, #tpu.memory_space<vmem>>, %arg7: memref<4x1xf32, #tpu.memory_space<vmem>>, %arg8: memref<4x128xf32, #tpu.memory_space<vmem>>, %arg9: memref<4x128xf32, #tpu.memory_space<vmem>>) attributes {dimension_semantics = [#tpu.dimension_semantics<parallel>, #tpu.dimension_semantics<arbitrary>, #tpu.dimension_semantics<arbitrary>], iteration_bounds = array<i64: 1, 1, 1>, scalar_prefetch = 0 : i64, scratch_operands = 2 : i64, tpu.core_type = #tpu.core_type<tc>, window_params = [{transform_indices = @transform_0, window_bounds = array<i64: 2, 4, 256>}, {transform_indices = @transform_1, window_bounds = array<i64: 4, 1>}, {transform_indices = @transform_2, window_bounds = array<i64: 4, 1>}, {transform_indices = @transform_3, window_bounds = array<i64: 4, 1>}, {transform_indices = @transform_4, window_bounds = array<i64: 4, 1>}]} {
    %c0_i32 = arith.constant 0 : i32
    %0 = arith.cmpi eq, %arg1, %c0_i32 : i32
    %c0_i32_0 = arith.constant 0 : i32
    %1 = arith.cmpi eq, %arg2, %c0_i32_0 : i32
    %2 = arith.andi %0, %1 : i1
    %c0_i32_1 = arith.constant 0 : i32
    %3 = arith.cmpi eq, %arg1, %c0_i32_1 : i32
    %c0_i32_2 = arith.constant 0 : i32
    %4 = arith.cmpi eq, %arg2, %c0_i32_2 : i32
    %5 = arith.andi %3, %4 : i1
    %6 = arith.extui %2 : i1 to i32
    %c0_i32_3 = arith.constant 0 : i32
    %7 = arith.cmpi ne, %6, %c0_i32_3 : i32
    scf.if %7 {
      %cst_22 = arith.constant 0.000000e+00 : f32
      %37 = vector.broadcast %cst_22 : f32 to vector<4x128xf32>
      %c0_23 = arith.constant 0 : index
      %c0_24 = arith.constant 0 : index
      %38 = vector.load %arg8[%c0_23, %c0_24] : memref<4x128xf32, #tpu.memory_space<vmem>>, vector<4x128xf32>
      tpu.vector_store %arg8[%c0_23, %c0_24], %37 {strides = array<i32>} : memref<4x128xf32, #tpu.memory_space<vmem>>, vector<4x128xf32>,
      %cst_25 = arith.constant 0.000000e+00 : f32
      %39 = vector.broadcast %cst_25 : f32 to vector<4x128xf32>
      %c0_26 = arith.constant 0 : index
      %c0_27 = arith.constant 0 : index
      %40 = vector.load %arg9[%c0_26, %c0_27] : memref<4x128xf32, #tpu.memory_space<vmem>>, vector<4x128xf32>
      tpu.vector_store %arg9[%c0_26, %c0_27], %39 {strides = array<i32>} : memref<4x128xf32, #tpu.memory_space<vmem>>, vector<4x128xf32>,
    } else {
    }
    %cst = arith.constant 0.000000e+00 : f32
    %8 = vector.broadcast %cst : f32 to vector<4x128xf32>
    %c0 = arith.constant 0 : index
    %c0_4 = arith.constant 0 : index
    %c0_5 = arith.constant 0 : index
    %9 = vector.load %arg3[%c0, %c0_4, %c0_5] : memref<2x4x256xf32, #tpu.memory_space<vmem>>, vector<1x4x128xf32>
    %10 = vector.shape_cast %9 : vector<1x4x128xf32> to vector<4x128xf32>
    %11 = arith.addf %8, %10 : vector<4x128xf32>
    %12 = arith.mulf %10, %10 : vector<4x128xf32>
    %13 = arith.addf %8, %12 : vector<4x128xf32>
    %c0_6 = arith.constant 0 : index
    %c0_7 = arith.constant 0 : index
    %c128 = arith.constant 128 : index
    %14 = vector.load %arg3[%c0_6, %c0_7, %c128] : memref<2x4x256xf32, #tpu.memory_space<vmem>>, vector<1x4x128xf32>
    %15 = vector.shape_cast %14 : vector<1x4x128xf32> to vector<4x128xf32>
    %16 = arith.addf %11, %15 : vector<4x128xf32>
    %17 = arith.mulf %15, %15 : vector<4x128xf32>
    %18 = arith.addf %13, %17 : vector<4x128xf32>
    %c1 = arith.constant 1 : index
    %c0_8 = arith.constant 0 : index
    %c0_9 = arith.constant 0 : index
    %19 = vector.load %arg3[%c1, %c0_8, %c0_9] : memref<2x4x256xf32, #tpu.memory_space<vmem>>, vector<1x4x128xf32>
    %20 = vector.shape_cast %19 : vector<1x4x128xf32> to vector<4x128xf32>
    %21 = arith.addf %16, %20 : vector<4x128xf32>
    %22 = arith.mulf %20, %20 : vector<4x128xf32>
    %23 = arith.addf %18, %22 : vector<4x128xf32>
    %c1_10 = arith.constant 1 : index
    %c0_11 = arith.constant 0 : index
    %c128_12 = arith.constant 128 : index
    %24 = vector.load %arg3[%c1_10, %c0_11, %c128_12] : memref<2x4x256xf32, #tpu.memory_space<vmem>>, vector<1x4x128xf32>
    %25 = vector.shape_cast %24 : vector<1x4x128xf32> to vector<4x128xf32>
    %26 = arith.addf %21, %25 : vector<4x128xf32>
    %27 = arith.mulf %25, %25 : vector<4x128xf32>
    %28 = arith.addf %23, %27 : vector<4x128xf32>
    %c0_13 = arith.constant 0 : index
    %c0_14 = arith.constant 0 : index
    %29 = vector.load %arg8[%c0_13, %c0_14] : memref<4x128xf32, #tpu.memory_space<vmem>>, vector<4x128xf32>
    %30 = arith.addf %29, %26 : vector<4x128xf32>
    %c0_15 = arith.constant 0 : index
    %c0_16 = arith.constant 0 : index
    %31 = vector.load %arg8[%c0_15, %c0_16] : memref<4x128xf32, #tpu.memory_space<vmem>>, vector<4x128xf32>
    tpu.vector_store %arg8[%c0_15, %c0_16], %30 {strides = array<i32>} : memref<4x128xf32, #tpu.memory_space<vmem>>, vector<4x128xf32>,
    %c0_17 = arith.constant 0 : index
    %c0_18 = arith.constant 0 : index
    %32 = vector.load %arg9[%c0_17, %c0_18] : memref<4x128xf32, #tpu.memory_space<vmem>>, vector<4x128xf32>
    %33 = arith.addf %32, %28 : vector<4x128xf32>
    %c0_19 = arith.constant 0 : index
    %c0_20 = arith.constant 0 : index
    %34 = vector.load %arg9[%c0_19, %c0_20] : memref<4x128xf32, #tpu.memory_space<vmem>>, vector<4x128xf32>
    tpu.vector_store %arg9[%c0_19, %c0_20], %33 {strides = array<i32>} : memref<4x128xf32, #tpu.memory_space<vmem>>, vector<4x128xf32>,
    %35 = arith.extui %5 : i1 to i32
    %c0_i32_21 = arith.constant 0 : i32
    %36 = arith.cmpi ne, %35, %c0_i32_21 : i32
    scf.if %36 {
      %c0_22 = arith.constant 0 : index
      %c0_23 = arith.constant 0 : index
      %37 = vector.load %arg8[%c0_22, %c0_23] : memref<4x128xf32, #tpu.memory_space<vmem>>, vector<4x128xf32>
      %cst_24 = arith.constant dense<0.000000e+00> : vector<4xf32>
      %38 = vector.multi_reduction <add>, %37, %cst_24 [1] : vector<4x128xf32> to vector<4xf32>
      %39 = vector.shape_cast %38 : vector<4xf32> to vector<4x1xf32>
      %cst_25 = arith.constant 0.001953125 : f32
      %40 = vector.broadcast %cst_25 : f32 to vector<4x1xf32>
      %41 = arith.mulf %39, %40 : vector<4x1xf32>
      %c0_26 = arith.constant 0 : index
      %c0_27 = arith.constant 0 : index
      %42 = vector.load %arg9[%c0_26, %c0_27] : memref<4x128xf32, #tpu.memory_space<vmem>>, vector<4x128xf32>
      %cst_28 = arith.constant dense<0.000000e+00> : vector<4xf32>
      %43 = vector.multi_reduction <add>, %42, %cst_28 [1] : vector<4x128xf32> to vector<4xf32>
      %44 = vector.shape_cast %43 : vector<4xf32> to vector<4x1xf32>
      %cst_29 = arith.constant 0.001953125 : f32
      %45 = vector.broadcast %cst_29 : f32 to vector<4x1xf32>
      %46 = arith.mulf %44, %45 : vector<4x1xf32>
      %47 = arith.mulf %41, %41 : vector<4x1xf32>
      %48 = arith.subf %46, %47 : vector<4x1xf32>
      %cst_30 = arith.constant 0.000000e+00 : f32
      %49 = vector.broadcast %cst_30 : f32 to vector<4x1xf32>
      %50 = arith.maximumf %48, %49 : vector<4x1xf32>
      %cst_31 = arith.constant 9.99999974E-6 : f32
      %51 = vector.broadcast %cst_31 : f32 to vector<4x1xf32>
      %52 = arith.addf %50, %51 : vector<4x1xf32>
      %53 = math.rsqrt %52 : vector<4x1xf32>
      %c0_32 = arith.constant 0 : index
      %c0_33 = arith.constant 0 : index
      %54 = vector.load %arg4[%c0_32, %c0_33] : memref<4x1xf32, #tpu.memory_space<vmem>>, vector<4x1xf32>
      %55 = arith.mulf %54, %53 : vector<4x1xf32>
      %c0_34 = arith.constant 0 : index
      %c0_35 = arith.constant 0 : index
      %56 = vector.load %arg6[%c0_34, %c0_35] : memref<4x1xf32, #tpu.memory_space<vmem>>, vector<4x1xf32>
      tpu.vector_store %arg6[%c0_34, %c0_35], %55 {strides = array<i32>} : memref<4x1xf32, #tpu.memory_space<vmem>>, vector<4x1xf32>,
      %c0_36 = arith.constant 0 : index
      %c0_37 = arith.constant 0 : index
      %57 = vector.load %arg5[%c0_36, %c0_37] : memref<4x1xf32, #tpu.memory_space<vmem>>, vector<4x1xf32>
      %58 = arith.mulf %41, %55 : vector<4x1xf32>
      %59 = arith.subf %57, %58 : vector<4x1xf32>
      %c0_38 = arith.constant 0 : index
      %c0_39 = arith.constant 0 : index
      %60 = vector.load %arg7[%c0_38, %c0_39] : memref<4x1xf32, #tpu.memory_space<vmem>>, vector<4x1xf32>
      tpu.vector_store %arg7[%c0_38, %c0_39], %59 {strides = array<i32>} : memref<4x1xf32, #tpu.memory_space<vmem>>, vector<4x1xf32>,
    } else {
    }
    return
  }
  func.func @transform_0(%arg0: i32, %arg1: i32, %arg2: i32) -> (i32, i32, i32) {
    %c0_i32 = arith.constant 0 : i32
    return %arg1, %arg0, %arg2 : i32, i32, i32
  }
  func.func @transform_1(%arg0: i32, %arg1: i32, %arg2: i32) -> (i32, i32) {
    %c0_i32 = arith.constant 0 : i32
    %c0_i32_0 = arith.constant 0 : i32
    return %arg0, %c0_i32 : i32, i32
  }
  func.func @transform_2(%arg0: i32, %arg1: i32, %arg2: i32) -> (i32, i32) {
    %c0_i32 = arith.constant 0 : i32
    %c0_i32_0 = arith.constant 0 : i32
    return %arg0, %c0_i32 : i32, i32
  }
  func.func @transform_3(%arg0: i32, %arg1: i32, %arg2: i32) -> (i32, i32) {
    %c0_i32 = arith.constant 0 : i32
    %c0_i32_0 = arith.constant 0 : i32
    return %arg0, %c0_i32 : i32, i32
  }
  func.func @transform_4(%arg0: i32, %arg1: i32, %arg2: i32) -> (i32, i32) {
    %c0_i32 = arith.constant 0 : i32
    %c0_i32_0 = arith.constant 0 : i32
    return %arg0, %c0_i32 : i32, i32
  }
}

</mosaic_0001>

<llo_original>
// kernel: tpu_custom_call.1
$region0: #{tpu_custom_call.1}
  #allocation0 [shape = 'u32[]', space=smem, size = 0x4, offset = 0x4, fixed_abs, tag = 'smem constant byte address 0x4 - core index']
  #allocation1 [shape = 'u32[144,128]{1,0:T(1,128)}', space=vmem, size = 0x12000, scoped, tag = 'internal scratch']
  #allocation2 [shape = 'f32[4,128]{1,0:T(4,128)}', space=vmem, size = 0x800, scoped, tag = 'scratch operand']
  #allocation3 [shape = 'f32[4,128]{1,0:T(4,128)}', space=vmem, size = 0x800, scoped, tag = 'scratch operand']
  %s0 = inlined_call_operand.hbm [shape: f32[2,4,256], index: 0, kind: input, shape index: {}]
  %s1 = inlined_call_operand.vmem [shape: f32[4,1], index: 1, kind: input, shape index: {}]
  %s2 = inlined_call_operand.vmem [shape: f32[4,1], index: 2, kind: input, shape index: {}]
  %s3 = inlined_call_operand.vmem [shape: f32[4,1], index: 3, kind: output, shape index: {0}]
  %s4 = inlined_call_operand.vmem [shape: f32[4,1], index: 4, kind: output, shape index: {1}]
  %5 = xla_tuple %s3, %s4
  %s6 = sld [smem:[#allocation0]]
  $region42: #{tpu_custom_call.1} parent=0
    _
  %s8 = ssub.s32 1, %s6
  %s9 = scalar_select 0, %s8, %s6
  $region1: #{tpu_custom_call.1} parent=0
    #allocation4 [shape = 'u8[8192]{0}', space=vmem, size = 0x2000, scoped, tag = 'input window, operand 0, single buffered']
    #allocation5 [shape = 's32[1]{0}', space=sflag, size = 0x4, scoped, tag = 'scoped memory for tpu_custom_call.1']
    %10 = vsyncpa [#allocation5], 0
    // Predicated region
    $region2: #{tpu_custom_call.1} parent=1 // pred_check
      _
    $region3: #{tpu_custom_call.1} parent=1 // pred_check_branch
      %12 = sbr.rel (0) target = $region5
    $region4: #{tpu_custom_call.1} parent=1 // pred_region
      %s14 = ssub.s32 256, 256
      %15 = vsyncadd [#allocation5], %s14
      %s16 = sshll.u32 [#allocation4], 4
      %s17 = int_to_ptr.vmem [resolvable:$true] %s16
      %22 = dma.hbm_to_vmem [thread:$0]  %s0, 256, %s17, [#allocation5], 128, 128, 8
    $region5: #{tpu_custom_call.1} parent=1 // pred_fallthru
      _
    // Predicated region
    $region6: #{tpu_custom_call.1} parent=1 // pred_check
      _
    $region7: #{tpu_custom_call.1} parent=1 // pred_check_branch
      %24 = sbr.rel (0) target = $region9
    $region8: #{tpu_custom_call.1} parent=1 // pred_region
      _
    $region9: #{tpu_custom_call.1} parent=1 // pred_fallthru
      _
    // Predicated region
    $region10: #{tpu_custom_call.1} parent=1 // pred_check
      _
    $region11: #{tpu_custom_call.1} parent=1 // pred_check_branch
      %26 = sbr.rel (0) target = $region13
    $region12: #{tpu_custom_call.1} parent=1 // pred_region
      _
    $region13: #{tpu_custom_call.1} parent=1 // pred_fallthru
      _
    // Predicated region
    $region14: #{tpu_custom_call.1} parent=1 // pred_check
      _
    $region15: #{tpu_custom_call.1} parent=1 // pred_check_branch
      %28 = sbr.rel (0) target = $region17
    $region16: #{tpu_custom_call.1} parent=1 // pred_region
      %29 = dma.done [#allocation5], 256
    $region17: #{tpu_custom_call.1} parent=1 // pred_fallthru
      _
    %p30 = scmp.eq.s32.totalorder 0, 0
    %p31 = scmp.eq.s32.totalorder 0, 0
    %p32 = pnand %p30, %p31
    %p33 = pneg %p32
    // Predicated region
    $region18: #{tpu_custom_call.1} parent=1 // pred_check
      _
    $region19: #{tpu_custom_call.1} parent=1 // pred_check_branch
      %35 = sbr.rel (%p32) target = $region21
    $region20: #{tpu_custom_call.1} parent=1 // pred_region
      %36 = vst [vmem:[#allocation2] sm:$0xf] 0.0
      %37 = vst [vmem:[#allocation3] sm:$0xf] 0.0
    $region21: #{tpu_custom_call.1} parent=1 // pred_fallthru
      _
    %v38 = vld [vmem:[#allocation4] sm:$0xf]
    %v39 = vadd.f32 %v38, 0.0
    %v40 = vmul.f32 %v38, %v38
    %v41 = vadd.f32 %v40, 0.0
    %v42 = vld [vmem:[#allocation4 + $0x4] sm:$0xf]
    %v43 = vadd.f32 %v39, %v42
    %v44 = vmul.f32 %v42, %v42
    %v45 = vadd.f32 %v41, %v44
    %s46 = scalar_lea.vmem [#allocation4], 8
    %v47 = vld [vmem:[%s46] sm:$0xf]
    %v48 = vadd.f32 %v43, %v47
    %v49 = vmul.f32 %v47, %v47
    %v50 = vadd.f32 %v45, %v49
    %v51 = vld [vmem:[%s46 + $0x4] sm:$0xf]
    %v52 = vadd.f32 %v48, %v51
    %v53 = vmul.f32 %v51, %v51
    %v54 = vadd.f32 %v50, %v53
    %v55 = vld [vmem:[#allocation2] sm:$0xf]
    %v56 = vadd.f32 %v55, %v52
    %57 = vst [vmem:[#allocation2] sm:$0xf] %v56
    %v58 = vld [vmem:[#allocation3] sm:$0xf]
    %v59 = vadd.f32 %v58, %v54
    %60 = vst [vmem:[#allocation3] sm:$0xf] %v59
    // Predicated region
    $region22: #{tpu_custom_call.1} parent=1 // pred_check
      _
    $region23: #{tpu_custom_call.1} parent=1 // pred_check_branch
      %62 = sbr.rel (%p32) target = $region25
    $region24: #{tpu_custom_call.1} parent=1 // pred_region
      %v63 = vld [vmem:[#allocation2] sm:$0xf]
      %vm64 = vcmask 1043456
      %v65 = vsel %vm64, %v63, 0.0
      %66 = vadd.xlane.f32.xlu0 %v65
      %v67 = vpop.xlane.xlu0 %66
      %v68 = vmul.f32 %v67, 0.001953125
      %v69 = vld [vmem:[#allocation3] sm:$0xf]
      %v70 = vsel %vm64, %v69, 0.0
      %71 = vadd.xlane.f32.xlu0 %v70
      %v72 = vpop.xlane.xlu0 %71
      %v73 = vmul.f32 %v72, 0.001953125
      %v74 = vmul.f32 %v68, %v68
      %v75 = vsub.f32 %v73, %v74
      %v76 = vmax.f32 %v75, 0.0
      %v77 = vadd.f32 %v76, 1e-05
      %v78 = vrsqrt.pop %v77
      %v79 = vld [vmem:[%s1] sm:$0xf]
      %v80 = vmul.f32 %v79, %v78
      %vm81 = vcmask 3072
      %82 = vst.msk [vmem:[%s3] sm:$0xf] %vm81, %v80
      %v83 = vld [vmem:[%s2] sm:$0xf]
      %v84 = vmul.f32 %v68, %v80
      %v85 = vsub.f32 %v83, %v84
      %86 = vst.msk [vmem:[%s4] sm:$0xf] %vm81, %v85
    $region25: #{tpu_custom_call.1} parent=1 // pred_fallthru
      _
    // Predicated region
    $region26: #{tpu_custom_call.1} parent=1 // pred_check
      _
    $region27: #{tpu_custom_call.1} parent=1 // pred_check_branch
      %88 = sbr.rel (0) target = $region29
    $region28: #{tpu_custom_call.1} parent=1 // pred_region
      _
    $region29: #{tpu_custom_call.1} parent=1 // pred_fallthru
      _
    // Predicated region
    $region30: #{tpu_custom_call.1} parent=1 // pred_check
      _
    $region31: #{tpu_custom_call.1} parent=1 // pred_check_branch
      %90 = sbr.rel (0) target = $region33
    $region32: #{tpu_custom_call.1} parent=1 // pred_region
      _
    $region33: #{tpu_custom_call.1} parent=1 // pred_fallthru
      _
    // Predicated region
    $region34: #{tpu_custom_call.1} parent=1 // pred_check
      _
    $region35: #{tpu_custom_call.1} parent=1 // pred_check_branch
      %92 = sbr.rel (0) target = $region37
    $region36: #{tpu_custom_call.1} parent=1 // pred_region
      _
    $region37: #{tpu_custom_call.1} parent=1 // pred_fallthru
      _
    // Predicated region
    $region38: #{tpu_custom_call.1} parent=1 // pred_check
      _
    $region39: #{tpu_custom_call.1} parent=1 // pred_check_branch
      %94 = sbr.rel (0) target = $region41
    $region40: #{tpu_custom_call.1} parent=1 // pred_region
      _
    $region41: #{tpu_custom_call.1} parent=1 // pred_fallthru
      _
    %95 = vsyncpa [#allocation5], 1

</llo_original>
